<compile_context>
chip_gen: v7x
topology: tpu7x:2x2x1
jax: 0.10.0
libtpu: 0.0.40
codegen_flags: <defaults>
</compile_context>

<pallas_src>
import jax
import jax.numpy as jnp
from jax.experimental import pallas as pl
from jax.experimental.pallas import tpu as pltpu

# Static recombination index pattern (48 entries = 8 groups x 6).
IDX = (0, 1, 2, 10, 11, 12,
       0, 1, 3, 10, 11, 13,
       0, 1, 4, 10, 11, 14,
       0, 1, 5, 10, 11, 15,
       0, 1, 6, 10, 11, 16,
       0, 1, 7, 10, 11, 17,
       0, 1, 8, 10, 11, 18,
       0, 1, 9, 10, 11, 19)

_N_GROUPS = 8                              # output axis 2
_N_PER_GROUP = 6                           # output axis 3
_N_OUT_ROWS = _N_GROUPS * _N_PER_GROUP     # 48 flat slab rows
_N_SRC_ROWS = 20                           # rows of m actually referenced
_SRC_BLOCK_ROWS = 24                       # 8-aligned input window when m >= 24


def _recombine_kernel(x_ref, o_ref):
    # x_ref: (T, m_blk, d) VMEM tile; only rows 0..19 are read.
    # o_ref: (T, 48, d) VMEM tile; written as one dense slab.
    rows_01 = x_ref[:, 0:2, :]        # rows 0, 1   (shared by every group)
    rows_1011 = x_ref[:, 10:12, :]    # rows 10, 11 (shared by every group)
    parts = []
    for g in range(_N_GROUPS):
        # Group g output rows, in order: [0, 1, 2+g, 10, 11, 12+g].
        parts.append(rows_01)
        parts.append(x_ref[:, 2 + g:3 + g, :])
        parts.append(rows_1011)
        parts.append(x_ref[:, 12 + g:13 + g, :])
    # Single dense (T, 48, d) store instead of 48 masked single-sublane writes.
    o_ref[...] = jnp.concatenate(parts, axis=1)


def _plan(bs, src_rows, d, itemsize):
    """Pick positions-per-step T and a VMEM limit from real padded block bytes."""
    sub = max(8, 32 // itemsize)               # sublane tile: f32 8, bf16 16, int8 32
    lanes = pl.cdiv(d, 128) * 128              # lane padding in VMEM
    in_rows = pl.cdiv(src_rows, sub) * sub
    out_rows = pl.cdiv(_N_OUT_ROWS, sub) * sub
    per_pos = 2 * (in_rows + out_rows) * lanes * itemsize   # double-buffered in + out
    budget = 12 * 1024 * 1024                  # fits v5e (16 MiB) / v6e / v7x defaults
    t = max(1, min(bs, budget // per_pos))
    if bs >= 8:
        t = min(t, pl.cdiv(bs, 8))             # >=8 grid steps -> >=4 per TC on v7x
    elif bs > 1:
        t = min(t, pl.cdiv(bs, 2))             # at least give both cores work
    steps = pl.cdiv(bs, t)
    if steps > 1 and steps % 2 == 1:           # even step count balances megacore
        t = max(1, pl.cdiv(bs, steps + 1))
    t = int(t)
    vmem_needed = t * per_pos
    vmem_limit = int(min(100 * 1024 * 1024,
                         max(vmem_needed + (2 << 20), 16 * 1024 * 1024)))
    return t, vmem_limit


def recombine(x):
    """x: (b, s, m, d) with m >= 20. Returns (b, s, 8, 6, d)."""
    b, s, m, d = x.shape
    assert m >= _N_SRC_ROWS, "Recombine requires at least 20 entries along axis 2"
    dtype = x.dtype
    itemsize = jnp.dtype(dtype).itemsize

    bs = b * s
    x3 = x.reshape(bs, m, d)                   # metadata-only reshape

    # Input window: full m when m < 24 (block dim == array dim is always legal),
    # otherwise an 8-aligned 24-row window.  Rows >= 20 are never read, and no
    # wrapper-side slice/copy (extra HBM pass) is needed.
    src_rows = m if m < _SRC_BLOCK_ROWS else _SRC_BLOCK_ROWS

    t, vmem_limit = _plan(bs, src_rows, d, itemsize)
    grid = (pl.cdiv(bs, t),)

    out = pl.pallas_call(
        _recombine_kernel,
        out_shape=jax.ShapeDtypeStruct((bs, _N_OUT_ROWS, d), dtype),
        grid=grid,
        in_specs=[pl.BlockSpec((t, src_rows, d), lambda i: (i, 0, 0))],
        out_specs=pl.BlockSpec((t, _N_OUT_ROWS, d), lambda i: (i, 0, 0)),
        compiler_params=pltpu.CompilerParams(
            dimension_semantics=("parallel",),
            vmem_limit_bytes=vmem_limit),
        cost_estimate=pl.CostEstimate(
            flops=0,
            transcendentals=0,
            bytes_accessed=bs * (src_rows + _N_OUT_ROWS) * d * itemsize),
    )(x3)

    # TODO(synk): for d < 128 every load/store is lane-masked; if the real
    # workload keeps d small, fuse this gather into the consumer kernel or
    # fold d into the lane axis instead of shipping it standalone.
    return out.reshape(b, s, _N_GROUPS, _N_PER_GROUP, d)


def recombine_ref(x):
    """Pure-JAX reference matching the PyTorch semantics."""
    b, s, m, d = x.shape
    return x[:, :, jnp.array(IDX)].reshape(b, s, 8, 6, d)


if __name__ == "__main__":
    key = jax.random.PRNGKey(0)
    k1, k2 = jax.random.split(key)

    # Case 1: m == 20 (exactly the referenced rows).
    b, s, m, d = 2, 3, 20, 16
    x = jax.random.normal(k1, (b, s, m, d), dtype=jnp.float32)
    out = jax.block_until_ready(recombine(x))
    assert out.shape == (b, s, 8, 6, d), out.shape
    assert jnp.array_equal(out, recombine_ref(x)), "mismatch vs reference (m=20)"

    # Case 2: m > 20 (extra rows ignored by the BlockSpec window, no wrapper copy).
    m2 = 26
    x2 = jax.random.normal(k2, (b, s, m2, d), dtype=jnp.float32)
    out2 = jax.block_until_ready(recombine(x2))
    assert out2.shape == (b, s, 8, 6, d), out2.shape
    assert jnp.array_equal(out2, recombine_ref(x2)), "mismatch vs reference (m=26)"

    print("KERNEL_OK")
</pallas_src>

<mosaic_0001>
module attributes {stable_mosaic.version = 11 : i64} {
  func.func @_recombine_kernel(%arg0: i32, %arg1: memref<3x20x16xf32, #tpu.memory_space<vmem>>, %arg2: memref<3x48x16xf32, #tpu.memory_space<vmem>>) attributes {dimension_semantics = [#tpu.dimension_semantics<parallel>], iteration_bounds = array<i64: 2>, scalar_prefetch = 0 : i64, scratch_operands = 0 : i64, tpu.core_type = #tpu.core_type<tc>, window_params = [{transform_indices = @transform_0, window_bounds = array<i64: 3, 20, 16>}, {transform_indices = @transform_1, window_bounds = array<i64: 3, 48, 16>}]} {
    %c0 = arith.constant 0 : index
    %c0_0 = arith.constant 0 : index
    %c0_1 = arith.constant 0 : index
    %0 = vector.load %arg1[%c0, %c0_0, %c0_1] : memref<3x20x16xf32, #tpu.memory_space<vmem>>, vector<3x2x16xf32>
    %c0_2 = arith.constant 0 : index
    %c10 = arith.constant 10 : index
    %c0_3 = arith.constant 0 : index
    %1 = vector.load %arg1[%c0_2, %c10, %c0_3] : memref<3x20x16xf32, #tpu.memory_space<vmem>>, vector<3x2x16xf32>
    %c0_4 = arith.constant 0 : index
    %c2 = arith.constant 2 : index
    %c0_5 = arith.constant 0 : index
    %2 = vector.load %arg1[%c0_4, %c2, %c0_5] : memref<3x20x16xf32, #tpu.memory_space<vmem>>, vector<3x1x16xf32>
    %c0_6 = arith.constant 0 : index
    %c12 = arith.constant 12 : index
    %c0_7 = arith.constant 0 : index
    %3 = vector.load %arg1[%c0_6, %c12, %c0_7] : memref<3x20x16xf32, #tpu.memory_space<vmem>>, vector<3x1x16xf32>
    %c0_8 = arith.constant 0 : index
    %c3 = arith.constant 3 : index
    %c0_9 = arith.constant 0 : index
    %4 = vector.load %arg1[%c0_8, %c3, %c0_9] : memref<3x20x16xf32, #tpu.memory_space<vmem>>, vector<3x1x16xf32>
    %c0_10 = arith.constant 0 : index
    %c13 = arith.constant 13 : index
    %c0_11 = arith.constant 0 : index
    %5 = vector.load %arg1[%c0_10, %c13, %c0_11] : memref<3x20x16xf32, #tpu.memory_space<vmem>>, vector<3x1x16xf32>
    %c0_12 = arith.constant 0 : index
    %c4 = arith.constant 4 : index
    %c0_13 = arith.constant 0 : index
    %6 = vector.load %arg1[%c0_12, %c4, %c0_13] : memref<3x20x16xf32, #tpu.memory_space<vmem>>, vector<3x1x16xf32>
    %c0_14 = arith.constant 0 : index
    %c14 = arith.constant 14 : index
    %c0_15 = arith.constant 0 : index
    %7 = vector.load %arg1[%c0_14, %c14, %c0_15] : memref<3x20x16xf32, #tpu.memory_space<vmem>>, vector<3x1x16xf32>
    %c0_16 = arith.constant 0 : index
    %c5 = arith.constant 5 : index
    %c0_17 = arith.constant 0 : index
    %8 = vector.load %arg1[%c0_16, %c5, %c0_17] : memref<3x20x16xf32, #tpu.memory_space<vmem>>, vector<3x1x16xf32>
    %c0_18 = arith.constant 0 : index
    %c15 = arith.constant 15 : index
    %c0_19 = arith.constant 0 : index
    %9 = vector.load %arg1[%c0_18, %c15, %c0_19] : memref<3x20x16xf32, #tpu.memory_space<vmem>>, vector<3x1x16xf32>
    %c0_20 = arith.constant 0 : index
    %c6 = arith.constant 6 : index
    %c0_21 = arith.constant 0 : index
    %10 = vector.load %arg1[%c0_20, %c6, %c0_21] : memref<3x20x16xf32, #tpu.memory_space<vmem>>, vector<3x1x16xf32>
    %c0_22 = arith.constant 0 : index
    %c16 = arith.constant 16 : index
    %c0_23 = arith.constant 0 : index
    %11 = vector.load %arg1[%c0_22, %c16, %c0_23] : memref<3x20x16xf32, #tpu.memory_space<vmem>>, vector<3x1x16xf32>
    %c0_24 = arith.constant 0 : index
    %c7 = arith.constant 7 : index
    %c0_25 = arith.constant 0 : index
    %12 = vector.load %arg1[%c0_24, %c7, %c0_25] : memref<3x20x16xf32, #tpu.memory_space<vmem>>, vector<3x1x16xf32>
    %c0_26 = arith.constant 0 : index
    %c17 = arith.constant 17 : index
    %c0_27 = arith.constant 0 : index
    %13 = vector.load %arg1[%c0_26, %c17, %c0_27] : memref<3x20x16xf32, #tpu.memory_space<vmem>>, vector<3x1x16xf32>
    %c0_28 = arith.constant 0 : index
    %c8 = arith.constant 8 : index
    %c0_29 = arith.constant 0 : index
    %14 = vector.load %arg1[%c0_28, %c8, %c0_29] : memref<3x20x16xf32, #tpu.memory_space<vmem>>, vector<3x1x16xf32>
    %c0_30 = arith.constant 0 : index
    %c18 = arith.constant 18 : index
    %c0_31 = arith.constant 0 : index
    %15 = vector.load %arg1[%c0_30, %c18, %c0_31] : memref<3x20x16xf32, #tpu.memory_space<vmem>>, vector<3x1x16xf32>
    %c0_32 = arith.constant 0 : index
    %c9 = arith.constant 9 : index
    %c0_33 = arith.constant 0 : index
    %16 = vector.load %arg1[%c0_32, %c9, %c0_33] : memref<3x20x16xf32, #tpu.memory_space<vmem>>, vector<3x1x16xf32>
    %c0_34 = arith.constant 0 : index
    %c19 = arith.constant 19 : index
    %c0_35 = arith.constant 0 : index
    %17 = vector.load %arg1[%c0_34, %c19, %c0_35] : memref<3x20x16xf32, #tpu.memory_space<vmem>>, vector<3x1x16xf32>
    %18 = tpu.concatenate %0, %2, %1, %3, %0, %4, %1, %5, %0, %6, %1, %7, %0, %8, %1, %9 in 1 : vector<3x2x16xf32>, vector<3x1x16xf32>, vector<3x2x16xf32>, vector<3x1x16xf32>, vector<3x2x16xf32>, vector<3x1x16xf32>, vector<3x2x16xf32>, vector<3x1x16xf32>, vector<3x2x16xf32>, vector<3x1x16xf32>, vector<3x2x16xf32>, vector<3x1x16xf32>, vector<3x2x16xf32>, vector<3x1x16xf32>, vector<3x2x16xf32>, vector<3x1x16xf32> -> vector<3x24x16xf32>
    %19 = tpu.concatenate %0, %10, %1, %11, %0, %12, %1, %13, %0, %14, %1, %15, %0, %16, %1, %17 in 1 : vector<3x2x16xf32>, vector<3x1x16xf32>, vector<3x2x16xf32>, vector<3x1x16xf32>, vector<3x2x16xf32>, vector<3x1x16xf32>, vector<3x2x16xf32>, vector<3x1x16xf32>, vector<3x2x16xf32>, vector<3x1x16xf32>, vector<3x2x16xf32>, vector<3x1x16xf32>, vector<3x2x16xf32>, vector<3x1x16xf32>, vector<3x2x16xf32>, vector<3x1x16xf32> -> vector<3x24x16xf32>
    %20 = tpu.concatenate %18, %19 in 1 : vector<3x24x16xf32>, vector<3x24x16xf32> -> vector<3x48x16xf32>
    %c0_36 = arith.constant 0 : index
    %c0_37 = arith.constant 0 : index
    %c0_38 = arith.constant 0 : index
    %21 = vector.load %arg2[%c0_36, %c0_37, %c0_38] : memref<3x48x16xf32, #tpu.memory_space<vmem>>, vector<3x48x16xf32>
    tpu.vector_store %arg2[%c0_36, %c0_37, %c0_38], %20 {strides = array<i32>} : memref<3x48x16xf32, #tpu.memory_space<vmem>>, vector<3x48x16xf32>,
    return
  }
  func.func @transform_0(%arg0: i32) -> (i32, i32, i32) {
    %c0_i32 = arith.constant 0 : i32
    %c0_i32_0 = arith.constant 0 : i32
    %c0_i32_1 = arith.constant 0 : i32
    return %arg0, %c0_i32, %c0_i32_0 : i32, i32, i32
  }
  func.func @transform_1(%arg0: i32) -> (i32, i32, i32) {
    %c0_i32 = arith.constant 0 : i32
    %c0_i32_0 = arith.constant 0 : i32
    %c0_i32_1 = arith.constant 0 : i32
    return %arg0, %c0_i32, %c0_i32_0 : i32, i32, i32
  }
}

</mosaic_0001>

<llo_original>
// kernel: tpu_custom_call.1
$region0: #{tpu_custom_call.1}
  #allocation0 [shape = 'u32[]', space=smem, size = 0x4, offset = 0x4, fixed_abs, tag = 'smem constant byte address 0x4 - core index']
  #allocation1 [shape = 'u32[144,128]{1,0:T(1,128)}', space=vmem, size = 0x12000, scoped, tag = 'internal scratch']
  %s0 = inlined_call_operand.vmem [shape: f32[6,20,16], index: 0, kind: input, shape index: {}]
  %s1 = inlined_call_operand.vmem [shape: f32[6,48,16], index: 1, kind: output, shape index: {}]
  %s2 = sld [smem:[#allocation0]]
  $region37: #{tpu_custom_call.1} parent=0
    _
  %s4 = ssub.s32 1, %s2
  %s5 = scalar_select 0, %s4, %s2
  loop: start=0, step=1, limit=4
  $region2: #{tpu_custom_call.1} parent=0 // loop_pre_header
    _
  $region3: #{tpu_custom_call.1} parent=0 // loop_header
    %s7 = sphi 0, %s11
    %p8 = scmp.ge.s32.totalorder %s7, 4
    %s17 = sphi 0, %s19
    %s20 = sphi 0, %s17
    %s21 = sphi 0, %s20
    %s37 = sphi 0, %s21
    %s43 = sphi 0, %s45
    %s46 = sphi 0, %s43
    %s47 = sphi 0, %s46
    %s63 = sphi 0, %s47
  $region4: #{tpu_custom_call.1} parent=0 // loop_header_branch
    %10 = sbr.rel (%p8) target = $region8
  $region5: #{tpu_custom_call.1} parent=0 // loop_body
    %s12 = ssub.s32 %s7, 1
    %s13 = ssub.s32 %s7, 2
    %s14 = sadd.s32 %s7, 1
    %s15 = ssub.s32 %s7, %s14
    %p16 = scmp.eq.s32.totalorder %s15, 0
    %s18 = sadd.s32 %s17, 1
    %s19 = scalar_select %p16, %s17, %s18
    %p22 = pneg %p16
    %p23 = scmp.eq.s32.totalorder %s7, 1
    %p24 = por %p22, %p23
    %p25 = scmp.ne.s32.totalorder %s17, %s20
    %p26 = scmp.eq.s32.totalorder %s7, 0
    %p27 = por %p25, %p26
    %p28 = scmp.ne.s32.totalorder %s17, %s20
    %p29 = scmp.eq.s32.totalorder %s12, 1
    %p30 = por %p28, %p29
    %p31 = scmp.ne.s32.totalorder %s20, %s21
    %p32 = scmp.eq.s32.totalorder %s12, 0
    %p33 = por %p31, %p32
    %p34 = scmp.ne.s32.totalorder %s20, %s21
    %p35 = scmp.eq.s32.totalorder %s13, 1
    %p36 = por %p34, %p35
    %p38 = scmp.ne.s32.totalorder %s21, %s37
    %p39 = scmp.eq.s32.totalorder %s13, 0
    %p40 = por %p38, %p39
    %s41 = ssub.s32 %s7, %s14
    %p42 = scmp.eq.s32.totalorder %s41, 0
    %s44 = sadd.s32 %s43, 1
    %s45 = scalar_select %p42, %s43, %s44
    %p48 = pneg %p42
    %p49 = scmp.eq.s32.totalorder %s7, 1
    %p50 = por %p48, %p49
    %p51 = scmp.ne.s32.totalorder %s43, %s46
    %p52 = scmp.eq.s32.totalorder %s7, 0
    %p53 = por %p51, %p52
    %p54 = scmp.ne.s32.totalorder %s43, %s46
    %p55 = scmp.eq.s32.totalorder %s12, 1
    %p56 = por %p54, %p55
    %p57 = scmp.ne.s32.totalorder %s46, %s47
    %p58 = scmp.eq.s32.totalorder %s12, 0
    %p59 = por %p57, %p58
    %p60 = scmp.ne.s32.totalorder %s46, %s47
    %p61 = scmp.eq.s32.totalorder %s13, 1
    %p62 = por %p60, %p61
    %p64 = scmp.ne.s32.totalorder %s47, %s63
    %p65 = scmp.eq.s32.totalorder %s13, 0
    %p66 = por %p64, %p65
    %p67 = scmp.le.s32.totalorder 1, %s7
    %p68 = scmp.lt.s32.totalorder %s7, 3
    %p69 = pnand %p67, %p68
    %p70 = pneg %p69
    // Predicated region
    $region9: #{tpu_custom_call.1} parent=5 // pred_check
      _
    $region10: #{tpu_custom_call.1} parent=5 // pred_check_branch
      %72 = sbr.rel (%p69) target = $region12
    $region11: #{tpu_custom_call.1} parent=5 // pred_region
      %s73 = ssub.s32 %s7, 1
    $region12: #{tpu_custom_call.1} parent=5 // pred_fallthru
      _
    %p74 = scmp.lt.s32.totalorder %s7, 2
    // Predicated region
    $region13: #{tpu_custom_call.1} parent=5 // pred_check
      %p75 = pneg %p74
    $region14: #{tpu_custom_call.1} parent=5 // pred_check_branch
      %77 = sbr.rel (%p75) target = $region16
    $region15: #{tpu_custom_call.1} parent=5 // pred_region
      // Predicated region
      $region17: #{tpu_custom_call.1} parent=15 // pred_check
        %p78 = pneg %p27
      $region18: #{tpu_custom_call.1} parent=15 // pred_check_branch
        %80 = sbr.rel (%p78) target = $region20
      $region19: #{tpu_custom_call.1} parent=15 // pred_region
        %s81 = smul.u32 3, %s7
        %p82 = scmp.lt.s32.totalorder %s81, 5
        %s83 = scalar_select %p82, %s81, 5
        %s84 = smul.addr %s83, 3
        %s85 = smul.addr %s84, 8
        %s86 = scalar_lea.vmem %s0, %s85
        %s87 = smul.u32 3, %s7
      $region20: #{tpu_custom_call.1} parent=15 // pred_fallthru
        _
    $region16: #{tpu_custom_call.1} parent=5 // pred_fallthru
      _
    %p88 = scmp.le.s32.totalorder 1, %s7
    %p89 = scmp.lt.s32.totalorder %s7, 3
    %p90 = pnand %p88, %p89
    %p91 = pneg %p90
    // Predicated region
    $region21: #{tpu_custom_call.1} parent=5 // pred_check
      _
    $region22: #{tpu_custom_call.1} parent=5 // pred_check_branch
      %93 = sbr.rel (%p90) target = $region24
    $region23: #{tpu_custom_call.1} parent=5 // pred_region
      %s94 = ssub.s32 %s7, 1
      %s95 = smul.u32 3, %s12
      %p96 = scmp.lt.s32.totalorder %s95, 5
      %s97 = scalar_select %p96, %s95, 5
      %s98 = smul.addr %s97, 3
      %s99 = smul.addr %s98, 8
      %s100 = scalar_lea.vmem %s0, %s99
      %p101 = pneg %p33
      %p102 = pneg %p30
      %p103 = pneg %p59
      %p104 = pneg %p56
      %s105 = smul.u32 3, %s12
      %p106 = scmp.lt.s32.totalorder %s105, 5
      %s107 = scalar_select %p106, %s105, 5
      %s108 = smul.addr %s107, 6
      %s109 = smul.addr %s108, 8
      %s110 = scalar_lea.vmem %s1, %s109
      %s111 = smul.u32 3, %s12
      %p112 = scmp.lt.s32.totalorder %s111, 5
      %s113 = scalar_select %p112, %s111, 5
      %s114 = smul.addr %s113, 3
      %s115 = smul.addr %s114, 8
      %s116 = scalar_lea.vmem %s0, %s115
      %s117 = smul.u32 3, %s12
      %s118 = smul.u32 3, %s12
      %p119 = scmp.lt.s32.totalorder %s118, 5
      %s120 = scalar_select %p119, %s118, 5
      %s121 = smul.addr %s120, 6
      %s122 = smul.addr %s121, 8
      %s123 = scalar_lea.vmem %s1, %s122
      %s124 = smul.u32 3, %s12
      %v125 = vld [vmem:[%s116] sm:$0x3]
      %v126 = vld [vmem:[%s116 + $0x18] sm:$0x3]
      %v127 = vld [vmem:[%s116 + $0x30] sm:$0x3]
      %v128 = vld [vmem:[%s116 + $0xa] sm:$0x3]
      %v129 = vld [vmem:[%s116 + $0x22] sm:$0x3]
      %v130 = vld [vmem:[%s116 + $0x3a] sm:$0x3]
      %v131 = vld [vmem:[%s116 + $0x2] sm:$0x1]
      %v132 = vld [vmem:[%s116 + $0x1a] sm:$0x1]
      %v133 = vld [vmem:[%s116 + $0x32] sm:$0x1]
      %v134 = vld [vmem:[%s116 + $0xc] sm:$0x1]
      %v135 = vld [vmem:[%s116 + $0x24] sm:$0x1]
      %v136 = vld [vmem:[%s116 + $0x3c] sm:$0x1]
      %v137 = vld [vmem:[%s116 + $0x3] sm:$0x1]
      %v138 = vld [vmem:[%s116 + $0x1b] sm:$0x1]
      %v139 = vld [vmem:[%s116 + $0x33] sm:$0x1]
      %v140 = vld [vmem:[%s116 + $0xd] sm:$0x1]
      %v141 = vld [vmem:[%s116 + $0x25] sm:$0x1]
      %v142 = vld [vmem:[%s116 + $0x3d] sm:$0x1]
      %v143 = vld [vmem:[%s116 + $0x4] sm:$0x1]
      %v144 = vld [vmem:[%s116 + $0x1c] sm:$0x1]
      %v145 = vld [vmem:[%s116 + $0x34] sm:$0x1]
      %v146 = vld [vmem:[%s116 + $0xe] sm:$0x1]
      %v147 = vld [vmem:[%s116 + $0x26] sm:$0x1]
      %v148 = vld [vmem:[%s116 + $0x3e] sm:$0x1]
      %v149 = vld [vmem:[%s116 + $0x5] sm:$0x1]
      %v150 = vld [vmem:[%s116 + $0x1d] sm:$0x1]
      %v151 = vld [vmem:[%s116 + $0x35] sm:$0x1]
      %v152 = vld [vmem:[%s116 + $0xf] sm:$0x1]
      %v153 = vld [vmem:[%s116 + $0x27] sm:$0x1]
      %v154 = vld [vmem:[%s116 + $0x3f] sm:$0x1]
      %v155 = vld [vmem:[%s116 + $0x6] sm:$0x1]
      %v156 = vld [vmem:[%s116 + $0x1e] sm:$0x1]
      %v157 = vld [vmem:[%s116 + $0x36] sm:$0x1]
      %v158 = vld [vmem:[%s116 + $0x10] sm:$0x1]
      %v159 = vld [vmem:[%s116 + $0x28] sm:$0x1]
      %v160 = vld [vmem:[%s116 + $0x40] sm:$0x1]
      %v161 = vld [vmem:[%s116 + $0x7] sm:$0x1]
      %v162 = vld [vmem:[%s116 + $0x1f] sm:$0x1]
      %v163 = vld [vmem:[%s116 + $0x37] sm:$0x1]
      %v164 = vld [vmem:[%s116 + $0x11] sm:$0x1]
      %v165 = vld [vmem:[%s116 + $0x29] sm:$0x1]
      %v166 = vld [vmem:[%s116 + $0x41] sm:$0x1]
      %v167 = vld [vmem:[%s116 + $0x8] sm:$0x1]
      %v168 = vld [vmem:[%s116 + $0x20] sm:$0x1]
      %v169 = vld [vmem:[%s116 + $0x38] sm:$0x1]
      %v170 = vld [vmem:[%s116 + $0x12] sm:$0x1]
      %v171 = vld [vmem:[%s116 + $0x2a] sm:$0x1]
      %v172 = vld [vmem:[%s116 + $0x42] sm:$0x1]
      %v173 = vld [vmem:[%s116 + $0x9] sm:$0x1]
      %v174 = vld [vmem:[%s116 + $0x21] sm:$0x1]
      %v175 = vld [vmem:[%s116 + $0x39] sm:$0x1]
      %v176 = vld [vmem:[%s116 + $0x13] sm:$0x1]
      %v177 = vld [vmem:[%s116 + $0x2b] sm:$0x1]
      %v178 = vld [vmem:[%s116 + $0x43] sm:$0x1]
      %v182 = vrot.slane %v131, 6
      %v183 = vrot.slane %v132, 6
      %v184 = vrot.slane %v133, 6
      %v191 = vrot.slane %v128, 5
      %v192 = vrot.slane %v129, 5
      %v193 = vrot.slane %v130, 5
      %v200 = vrot.slane %v134, 3
      %v201 = vrot.slane %v135, 3
      %v202 = vrot.slane %v136, 3
      %v209 = vrot.slane %v125, 2
      %v210 = vrot.slane %v126, 2
      %v211 = vrot.slane %v127, 2
      %v215 = vrot.slane %v128, 7
      %v216 = vrot.slane %v129, 7
      %v217 = vrot.slane %v130, 7
      %v224 = vrot.slane %v140, 5
      %v225 = vrot.slane %v141, 5
      %v226 = vrot.slane %v142, 5
      %v230 = vrot.slane %v125, 4
      %v231 = vrot.slane %v126, 4
      %v232 = vrot.slane %v127, 4
      %v239 = vrot.slane %v143, 2
      %v240 = vrot.slane %v144, 2
      %v241 = vrot.slane %v145, 2
      %v245 = vrot.slane %v128, 1
      %v246 = vrot.slane %v129, 1
      %v247 = vrot.slane %v130, 1
      %v254 = vrot.slane %v146, 7
      %v255 = vrot.slane %v147, 7
      %v256 = vrot.slane %v148, 7
      %v260 = vrot.slane %v125, 6
      %v261 = vrot.slane %v126, 6
      %v262 = vrot.slane %v127, 6
      %v269 = vrot.slane %v149, 4
      %v270 = vrot.slane %v150, 4
      %v271 = vrot.slane %v151, 4
      %v275 = vrot.slane %v128, 3
      %v276 = vrot.slane %v129, 3
      %v277 = vrot.slane %v130, 3
      %v284 = vrot.slane %v152, 1
      %v285 = vrot.slane %v153, 1
      %v286 = vrot.slane %v154, 1
      %vm290 = vcmask 1041408
      %v291 = vsel %vm290, %v125, %v182
      %v292 = vsel %vm290, %v126, %v183
      %v293 = vsel %vm290, %v127, %v184
      %vm294 = vcmask 1042432
      %v295 = vsel %vm294, %v291, %v191
      %v296 = vsel %vm294, %v292, %v192
      %v297 = vsel %vm294, %v293, %v193
      %vm298 = vcmask 1044480
      %v299 = vsel %vm298, %v295, %v200
      %v300 = vsel %vm298, %v296, %v201
      %v301 = vsel %vm298, %v297, %v202
      %vm302 = vcmask 1045504
      %v303 = vsel %vm302, %v299, %v209
      %v304 = vsel %vm302, %v300, %v210
      %v305 = vsel %vm302, %v301, %v211
      %vm306 = vcmask 1040384
      %v307 = vsel %vm306, %v137, %v215
      %v308 = vsel %vm306, %v138, %v216
      %v309 = vsel %vm306, %v139, %v217
      %v310 = vsel %vm294, %v307, %v224
      %v311 = vsel %vm294, %v308, %v225
      %v312 = vsel %vm294, %v309, %v226
      %vm313 = vcmask 1043456
      %v314 = vsel %vm313, %v310, %v230
      %v315 = vsel %vm313, %v311, %v231
      %v316 = vsel %vm313, %v312, %v232
      %v317 = vsel %vm302, %v314, %v239
      %v318 = vsel %vm302, %v315, %v240
      %v319 = vsel %vm302, %v316, %v241
      %vm320 = vcmask 1046528
      %v321 = vsel %vm320, %v317, %v245
      %v322 = vsel %vm320, %v318, %v246
      %v323 = vsel %vm320, %v319, %v247
      %v324 = vsel %vm306, %v245, %v254
      %v325 = vsel %vm306, %v246, %v255
      %v326 = vsel %vm306, %v247, %v256
      %v327 = vsel %vm290, %v324, %v260
      %v328 = vsel %vm290, %v325, %v261
      %v329 = vsel %vm290, %v326, %v262
      %v330 = vsel %vm313, %v327, %v269
      %v331 = vsel %vm313, %v328, %v270
      %v332 = vsel %vm313, %v329, %v271
      %v333 = vsel %vm298, %v330, %v275
      %v334 = vsel %vm298, %v331, %v276
      %v335 = vsel %vm298, %v332, %v277
      %v336 = vsel %vm320, %v333, %v284
      %v337 = vsel %vm320, %v334, %v285
      %v338 = vsel %vm320, %v335, %v286
      %v342 = vrot.slane %v155, 6
      %v343 = vrot.slane %v156, 6
      %v344 = vrot.slane %v157, 6
      %v351 = vrot.slane %v158, 3
      %v352 = vrot.slane %v159, 3
      %v353 = vrot.slane %v160, 3
      %v360 = vrot.slane %v164, 5
      %v361 = vrot.slane %v165, 5
      %v362 = vrot.slane %v166, 5
      %v369 = vrot.slane %v167, 2
      %v370 = vrot.slane %v168, 2
      %v371 = vrot.slane %v169, 2
      %v378 = vrot.slane %v170, 7
      %v379 = vrot.slane %v171, 7
      %v380 = vrot.slane %v172, 7
      %v387 = vrot.slane %v173, 4
      %v388 = vrot.slane %v174, 4
      %v389 = vrot.slane %v175, 4
      %v396 = vrot.slane %v176, 1
      %v397 = vrot.slane %v177, 1
      %v398 = vrot.slane %v178, 1
      %v402 = vsel %vm290, %v125, %v342
      %v403 = vsel %vm290, %v126, %v343
      %v404 = vsel %vm290, %v127, %v344
      %v405 = vsel %vm294, %v402, %v191
      %v406 = vsel %vm294, %v403, %v192
      %v407 = vsel %vm294, %v404, %v193
      %v408 = vsel %vm298, %v405, %v351
      %v409 = vsel %vm298, %v406, %v352
      %v410 = vsel %vm298, %v407, %v353
      %v411 = vsel %vm302, %v408, %v209
      %v412 = vsel %vm302, %v409, %v210
      %v413 = vsel %vm302, %v410, %v211
      %v414 = vsel %vm306, %v161, %v215
      %v415 = vsel %vm306, %v162, %v216
      %v416 = vsel %vm306, %v163, %v217
      %v417 = vsel %vm294, %v414, %v360
      %v418 = vsel %vm294, %v415, %v361
      %v419 = vsel %vm294, %v416, %v362
      %v420 = vsel %vm313, %v417, %v230
      %v421 = vsel %vm313, %v418, %v231
      %v422 = vsel %vm313, %v419, %v232
      %v423 = vsel %vm302, %v420, %v369
      %v424 = vsel %vm302, %v421, %v370
      %v425 = vsel %vm302, %v422, %v371
      %v426 = vsel %vm320, %v423, %v245
      %v427 = vsel %vm320, %v424, %v246
      %v428 = vsel %vm320, %v425, %v247
      %v429 = vsel %vm306, %v245, %v378
      %v430 = vsel %vm306, %v246, %v379
      %v431 = vsel %vm306, %v247, %v380
      %v432 = vsel %vm290, %v429, %v260
      %v433 = vsel %vm290, %v430, %v261
      %v434 = vsel %vm290, %v431, %v262
      %v435 = vsel %vm313, %v432, %v387
      %v436 = vsel %vm313, %v433, %v388
      %v437 = vsel %vm313, %v434, %v389
      %v438 = vsel %vm298, %v435, %v275
      %v439 = vsel %vm298, %v436, %v276
      %v440 = vsel %vm298, %v437, %v277
      %v441 = vsel %vm320, %v438, %v396
      %v442 = vsel %vm320, %v439, %v397
      %v443 = vsel %vm320, %v440, %v398
      %vm444 = vcmask 130048
      %445 = vst.msk [vmem:[%s123] sm:$0xff] %vm444, %v303
      %446 = vst.msk [vmem:[%s123 + $0x8] sm:$0xff] %vm444, %v321
      %447 = vst.msk [vmem:[%s123 + $0x10] sm:$0xff] %vm444, %v336
      %448 = vst.msk [vmem:[%s123 + $0x18] sm:$0xff] %vm444, %v411
      %449 = vst.msk [vmem:[%s123 + $0x20] sm:$0xff] %vm444, %v426
      %450 = vst.msk [vmem:[%s123 + $0x28] sm:$0xff] %vm444, %v441
      %451 = vst.msk [vmem:[%s123 + $0x30] sm:$0xff] %vm444, %v304
      %452 = vst.msk [vmem:[%s123 + $0x38] sm:$0xff] %vm444, %v322
      %453 = vst.msk [vmem:[%s123 + $0x40] sm:$0xff] %vm444, %v337
      %454 = vst.msk [vmem:[%s123 + $0x48] sm:$0xff] %vm444, %v412
      %455 = vst.msk [vmem:[%s123 + $0x50] sm:$0xff] %vm444, %v427
      %456 = vst.msk [vmem:[%s123 + $0x58] sm:$0xff] %vm444, %v442
      %457 = vst.msk [vmem:[%s123 + $0x60] sm:$0xff] %vm444, %v305
      %458 = vst.msk [vmem:[%s123 + $0x68] sm:$0xff] %vm444, %v323
      %459 = vst.msk [vmem:[%s123 + $0x70] sm:$0xff] %vm444, %v338
      %460 = vst.msk [vmem:[%s123 + $0x78] sm:$0xff] %vm444, %v413
      %461 = vst.msk [vmem:[%s123 + $0x80] sm:$0xff] %vm444, %v428
      %462 = vst.msk [vmem:[%s123 + $0x88] sm:$0xff] %vm444, %v443
      %s463 = smul.u32 3, %s12
      %p464 = scmp.lt.s32.totalorder %s463, 5
      %s465 = scalar_select %p464, %s463, 5
      %s466 = smul.addr %s465, 6
      %s467 = smul.addr %s466, 8
      %s468 = scalar_lea.vmem %s1, %s467
      // Predicated region
      $region25: #{tpu_custom_call.1} parent=23 // pred_check
        %p469 = pneg %p56
      $region26: #{tpu_custom_call.1} parent=23 // pred_check_branch
        %471 = sbr.rel (%p469) target = $region28
      $region27: #{tpu_custom_call.1} parent=23 // pred_region
        %s472 = smul.u32 3, %s12
      $region28: #{tpu_custom_call.1} parent=23 // pred_fallthru
        _
    $region24: #{tpu_custom_call.1} parent=5 // pred_fallthru
      _
    %p473 = scmp.le.s32.totalorder 2, %s7
    // Predicated region
    $region29: #{tpu_custom_call.1} parent=5 // pred_check
      %p474 = pneg %p473
    $region30: #{tpu_custom_call.1} parent=5 // pred_check_branch
      %476 = sbr.rel (%p474) target = $region32
    $region31: #{tpu_custom_call.1} parent=5 // pred_region
      %s477 = ssub.s32 %s7, 2
      // Predicated region
      $region33: #{tpu_custom_call.1} parent=31 // pred_check
        %p478 = pneg %p62
      $region34: #{tpu_custom_call.1} parent=31 // pred_check_branch
        %480 = sbr.rel (%p478) target = $region36
      $region35: #{tpu_custom_call.1} parent=31 // pred_region
        %s481 = smul.u32 3, %s13
        %p482 = scmp.lt.s32.totalorder %s481, 5
        %s483 = scalar_select %p482, %s481, 5
        %s484 = smul.addr %s483, 6
        %s485 = smul.addr %s484, 8
        %s486 = scalar_lea.vmem %s1, %s485
      $region36: #{tpu_custom_call.1} parent=31 // pred_fallthru
        _
    $region32: #{tpu_custom_call.1} parent=5 // pred_fallthru
      _
  $region6: #{tpu_custom_call.1} parent=0 // loop_footer
    %s11 = sadd.s32 1, %s7
  $region7: #{tpu_custom_call.1} parent=0 // loop_footer_branch
    %6 = sbr.rel target = $region3
  $region8: #{tpu_custom_call.1} parent=0 // loop_exit
    _

</llo_original>
